<compile_context>
chip_gen: v6e
topology: v6e:2x2x1
jax: 0.10.0
libtpu: 0.0.40
codegen_flags: <defaults>
</compile_context>

<pallas_src>
import functools

import jax
import jax.numpy as jnp
from jax.experimental import pallas as pl
from jax.experimental.pallas import tpu as pltpu

_NEG_INIT = -1e30  # finite "minus infinity": avoids inf-inf=nan in rescales


def _ce_ls_kernel(logits_ref, out_ref, m_run, s_exp, s_x, *,
                  epsilon, num_classes, batch, mask_rows, mask_cols,
                  lane_parallel):
    # NOTE: program_id/num_programs must be bound at the kernel top level
    # (not inside pl.when bodies) -- only their *values* are used in branches.
    bi = pl.program_id(0)
    ci = pl.program_id(1)
    num_ct = pl.num_programs(1)
    is_last_ct = ci == num_ct - 1

    @pl.when(ci == 0)
    def _init():
        m_run[...] = jnp.full_like(m_run, _NEG_INIT)
        s_exp[...] = jnp.zeros_like(s_exp)
        s_x[...] = jnp.zeros_like(s_x)

    # (TB, TC) tile; DMA stayed in the input dtype, cast happens in-register.
    x = logits_ref[...].astype(jnp.float32)
    tb, tc = x.shape

    def _step(xm, xs):
        """Online-logsumexp + sum(x) update for one class tile.

        xm: tile with padded columns pushed to _NEG_INIT (excluded from max/exp)
        xs: tile with padded columns zeroed (excluded from sum(x))
        """
        if lane_parallel:
            # Lane-parallel accumulation: view the tile as nk strips of 128
            # lanes; everything here is elementwise (VALU/EUP), no XLU.
            nk = tc // 128
            strips_m = [xm[:, k * 128:(k + 1) * 128] for k in range(nk)]
            strips_s = [xs[:, k * 128:(k + 1) * 128] for k in range(nk)]
            tile_max = strips_m[0]
            for sm in strips_m[1:]:
                tile_max = jnp.maximum(tile_max, sm)
            m_new = jnp.maximum(m_run[...], tile_max)           # (TB,128)
            s_new = jnp.exp(m_run[...] - m_new) * s_exp[...]    # rescale once/tile
            sx_new = s_x[...]
            for sm, ss in zip(strips_m, strips_s):
                s_new = s_new + jnp.exp(sm - m_new)
                sx_new = sx_new + ss
            s_exp[...] = s_new
            s_x[...] = sx_new
            m_run[...] = m_new
        else:
            # Fallback (block_c not a multiple of 128 => single full-width
            # class tile): classic per-tile cross-lane reductions.
            tile_max = jnp.max(xm, axis=1, keepdims=True)       # (TB,1)
            m_new = jnp.maximum(m_run[...], tile_max)
            alpha = jnp.exp(m_run[...] - m_new)
            p = jnp.exp(xm - m_new)
            s_exp[...] = alpha * s_exp[...] + jnp.sum(p, axis=1, keepdims=True)
            s_x[...] = s_x[...] + jnp.sum(xs, axis=1, keepdims=True)
            m_run[...] = m_new

    if mask_cols:
        # Only the last class tile pays for the column mask.
        @pl.when(is_last_ct)
        def _masked_tile():
            col_ids = ci * tc + jax.lax.broadcasted_iota(jnp.int32, (tb, tc), 1)
            valid = col_ids < num_classes
            _step(jnp.where(valid, x, _NEG_INIT), jnp.where(valid, x, 0.0))

        @pl.when(jnp.logical_not(is_last_ct))
        def _full_tile():
            _step(x, x)
    else:
        _step(x, x)

    @pl.when(is_last_ct)
    def _finalize():
        if lane_parallel:
            m_lane = m_run[...]                                       # (TB,128)
            m_row = jnp.max(m_lane, axis=1, keepdims=True)            # (TB,1)
            s_row = jnp.sum(jnp.exp(m_lane - m_row) * s_exp[...],
                            axis=1, keepdims=True)
            sx_row = jnp.sum(s_x[...], axis=1, keepdims=True)
        else:
            m_row = m_run[...]
            s_row = s_exp[...]
            sx_row = s_x[...]
        # loss_i = lse_i - (eps/K)*sum_j x_ij  - (1-eps)*x_i[t_i]
        # the last term is folded in by the wrapper (no targets in-kernel).
        per_sample = m_row + jnp.log(s_row) - (epsilon / num_classes) * sx_row
        if mask_rows:
            row_ids = bi * tb + jax.lax.broadcasted_iota(jnp.int32, (tb, 1), 0)
            per_sample = jnp.where(row_ids < batch, per_sample, 0.0)
        partial = jnp.sum(per_sample, axis=0, keepdims=True)          # (1,1)
        # Lane-dense (full 128-lane) store of the per-tile partial sum.
        out_ref[...] = jnp.broadcast_to(partial, (1, 1, 128))


def _pick_block_b(b, quantum, preferred=512):
    """Batch block: big, quantum-aligned, and >= 2 tiles when possible so the
    'parallel' batch axis can shard across both TensorCores (v7x megacore)."""
    if b <= quantum:
        return b
    tgt = min(preferred, pl.cdiv(b, 2))
    tgt = max(quantum, (tgt // quantum) * quantum)
    return min(tgt, b)


def _pick_block_c(c, preferred=4096, min_div=1024):
    """Class block: full C if it fits, else the largest multiple-of-128 divisor
    of C (no masking at all); fall back to `preferred` with last-tile masking
    only when no reasonably large divisor exists."""
    if c <= preferred:
        return c
    best = 0
    for d in range(128, preferred + 1, 128):
        if c % d == 0:
            best = d
    if best >= min_div:
        return best
    return preferred


def cross_entropy_label_smooth(inputs, targets, *, epsilon=0.1, reduction=True,
                               block_b=None, block_c=None):
    """inputs: (B, C) float logits; targets: (B,) int class ids. Returns mean loss."""
    # TODO(synk): reduction=False (per-sample) output path not implemented;
    # module default (mean reduction) is what we match here.
    assert reduction, "only the default reduction=True path is implemented"
    b, c = inputs.shape
    itemsize = jnp.dtype(inputs.dtype).itemsize
    quantum = max(8, 32 // itemsize)          # f32:8, bf16:16, int8/fp8:32

    if block_b is None:
        block_b = _pick_block_b(b, quantum)
    if block_c is None:
        block_c = _pick_block_c(c)

    num_bt = pl.cdiv(b, block_b)
    num_ct = pl.cdiv(c, block_c)
    lane_parallel = (block_c % 128 == 0)
    mask_rows = (b % block_b != 0)
    mask_cols = (c % block_c != 0)
    acc_w = 128 if lane_parallel else 1

    kernel = functools.partial(
        _ce_ls_kernel,
        epsilon=float(epsilon),
        num_classes=int(c),
        batch=int(b),
        mask_rows=mask_rows,
        mask_cols=mask_cols,
        lane_parallel=lane_parallel,
    )

    cost = pl.CostEstimate(
        flops=6 * b * c,
        transcendentals=b * c,
        bytes_accessed=int(inputs.nbytes) + num_bt * 128 * 4,
    )

    partials = pl.pallas_call(
        kernel,
        out_shape=jax.ShapeDtypeStruct((num_bt, 1, 128), jnp.float32),
        grid=(num_bt, num_ct),
        in_specs=[
            pl.BlockSpec((block_b, block_c), lambda bi, ci: (bi, ci)),  # logits
        ],
        out_specs=pl.BlockSpec((1, 1, 128), lambda bi, ci: (bi, 0, 0)),
        scratch_shapes=[
            pltpu.VMEM((block_b, acc_w), jnp.float32),   # running max (per lane)
            pltpu.VMEM((block_b, acc_w), jnp.float32),   # running sum(exp(x-m))
            pltpu.VMEM((block_b, acc_w), jnp.float32),   # running sum(x)
        ],
        compiler_params=pltpu.CompilerParams(
            dimension_semantics=("parallel", "arbitrary"),
            vmem_limit_bytes=48 * 1024 * 1024,           # v7x-safe (<=64 MiB)
        ),
        cost_estimate=cost,
    )(inputs)

    # Target-logit term handled outside the kernel: tiny (B,1) gather, then
    # loss = [sum_i (lse_i - (eps/K) sum_j x_ij) - (1-eps) sum_i x_i[t_i]] / B
    tgt = targets.astype(jnp.int32).reshape(b, 1)
    tgt_logit = jnp.take_along_axis(inputs, tgt, axis=1).astype(jnp.float32)
    total = jnp.sum(partials[:, 0, 0]) - (1.0 - float(epsilon)) * jnp.sum(tgt_logit)
    return total / b


def _reference(inputs, targets, epsilon=0.1):
    c = inputs.shape[1]
    logp = jax.nn.log_softmax(inputs.astype(jnp.float32), axis=1)
    onehot = jax.nn.one_hot(targets, c, dtype=jnp.float32)
    smooth = (1.0 - epsilon) * onehot + epsilon / c
    return jnp.mean(jnp.sum(-smooth * logp, axis=1))


if __name__ == "__main__":
    # Small shapes that still exercise batch tiling (10 = 8 + 2 masked rows)
    # and class tiling (300 = 2*128 + 44 masked cols in the last tile).
    batch = 10
    num_classes = 300
    epsilon = 0.1

    key = jax.random.PRNGKey(0)
    k1, k2 = jax.random.split(key)
    logits = jax.random.normal(k1, (batch, num_classes), dtype=jnp.float32)
    targets = jax.random.randint(k2, (batch,), 0, num_classes, dtype=jnp.int32)

    ref = _reference(logits, targets, epsilon=epsilon)

    # 1) Tiled path: lane-parallel accumulators + masked last class tile +
    #    masked last batch tile.
    loss_tiled = cross_entropy_label_smooth(logits, targets, epsilon=epsilon,
                                            block_b=8, block_c=128)
    loss_tiled = jax.block_until_ready(loss_tiled)
    assert jnp.allclose(loss_tiled, ref, atol=2e-5, rtol=2e-5), (loss_tiled, ref)

    # 2) Default block selection: single full-width class tile (simple path).
    loss_default = cross_entropy_label_smooth(logits, targets, epsilon=epsilon)
    loss_default = jax.block_until_ready(loss_default)
    assert jnp.allclose(loss_default, ref, atol=2e-5, rtol=2e-5), (loss_default, ref)

    print("KERNEL_OK")
</pallas_src>

<mosaic_0001>
module attributes {stable_mosaic.version = 11 : i64} {
  func.func @_ce_ls_kernel(%arg0: i32, %arg1: i32, %arg2: memref<8x128xf32, #tpu.memory_space<vmem>>, %arg3: memref<1x1x128xf32, #tpu.memory_space<vmem>>, %arg4: memref<8x128xf32, #tpu.memory_space<vmem>>, %arg5: memref<8x128xf32, #tpu.memory_space<vmem>>, %arg6: memref<8x128xf32, #tpu.memory_space<vmem>>) attributes {dimension_semantics = [#tpu.dimension_semantics<parallel>, #tpu.dimension_semantics<arbitrary>], iteration_bounds = array<i64: 2, 3>, scalar_prefetch = 0 : i64, scratch_operands = 3 : i64, tpu.core_type = #tpu.core_type<tc>, window_params = [{transform_indices = @transform_0, window_bounds = array<i64: 8, 128>}, {transform_indices = @transform_1, window_bounds = array<i64: 1, 1, 128>}]} {
    %c2_i32 = arith.constant 2 : i32
    %0 = arith.cmpi eq, %arg1, %c2_i32 : i32
    %c0_i32 = arith.constant 0 : i32
    %1 = arith.cmpi eq, %arg1, %c0_i32 : i32
    %2 = arith.extui %1 : i1 to i32
    %c0_i32_0 = arith.constant 0 : i32
    %3 = arith.cmpi ne, %2, %c0_i32_0 : i32
    scf.if %3 {
      %cst = arith.constant -1.000000e+30 : f32
      %12 = vector.broadcast %cst : f32 to vector<8x128xf32>
      %c0_5 = arith.constant 0 : index
      %c0_6 = arith.constant 0 : index
      %13 = vector.load %arg4[%c0_5, %c0_6] : memref<8x128xf32, #tpu.memory_space<vmem>>, vector<8x128xf32>
      tpu.vector_store %arg4[%c0_5, %c0_6], %12 {strides = array<i32>} : memref<8x128xf32, #tpu.memory_space<vmem>>, vector<8x128xf32>,
      %cst_7 = arith.constant 0.000000e+00 : f32
      %14 = vector.broadcast %cst_7 : f32 to vector<8x128xf32>
      %c0_8 = arith.constant 0 : index
      %c0_9 = arith.constant 0 : index
      %15 = vector.load %arg5[%c0_8, %c0_9] : memref<8x128xf32, #tpu.memory_space<vmem>>, vector<8x128xf32>
      tpu.vector_store %arg5[%c0_8, %c0_9], %14 {strides = array<i32>} : memref<8x128xf32, #tpu.memory_space<vmem>>, vector<8x128xf32>,
      %cst_10 = arith.constant 0.000000e+00 : f32
      %16 = vector.broadcast %cst_10 : f32 to vector<8x128xf32>
      %c0_11 = arith.constant 0 : index
      %c0_12 = arith.constant 0 : index
      %17 = vector.load %arg6[%c0_11, %c0_12] : memref<8x128xf32, #tpu.memory_space<vmem>>, vector<8x128xf32>
      tpu.vector_store %arg6[%c0_11, %c0_12], %16 {strides = array<i32>} : memref<8x128xf32, #tpu.memory_space<vmem>>, vector<8x128xf32>,
    } else {
    }
    %c0 = arith.constant 0 : index
    %c0_1 = arith.constant 0 : index
    %4 = vector.load %arg2[%c0, %c0_1] : memref<8x128xf32, #tpu.memory_space<vmem>>, vector<8x128xf32>
    %5 = arith.extui %0 : i1 to i32
    %c0_i32_2 = arith.constant 0 : i32
    %6 = arith.cmpi ne, %5, %c0_i32_2 : i32
    scf.if %6 {
      %c128_i32 = arith.constant 128 : i32
      %12 = arith.muli %arg1, %c128_i32 : i32
      %13 = tpu.iota {dimensions = array<i32: 1>} : vector<8x128xi32>
      %14 = vector.broadcast %12 : i32 to vector<8x128xi32>
      %15 = arith.addi %14, %13 : vector<8x128xi32>
      %c300_i32 = arith.constant 300 : i32
      %16 = vector.broadcast %c300_i32 : i32 to vector<8x128xi32>
      %17 = arith.cmpi slt, %15, %16 : vector<8x128xi32>
      %cst = arith.constant -1.000000e+30 : f32
      %18 = vector.broadcast %cst : f32 to vector<8x128xf32>
      %19 = arith.select %17, %4, %18 : vector<8x128xi1>, vector<8x128xf32>
      %cst_5 = arith.constant 0.000000e+00 : f32
      %20 = vector.broadcast %cst_5 : f32 to vector<8x128xf32>
      %21 = arith.select %17, %4, %20 : vector<8x128xi1>, vector<8x128xf32>
      %c0_6 = arith.constant 0 : index
      %c0_7 = arith.constant 0 : index
      %22 = vector.load %arg4[%c0_6, %c0_7] : memref<8x128xf32, #tpu.memory_space<vmem>>, vector<8x128xf32>
      %23 = arith.maximumf %22, %19 : vector<8x128xf32>
      %c0_8 = arith.constant 0 : index
      %c0_9 = arith.constant 0 : index
      %24 = vector.load %arg4[%c0_8, %c0_9] : memref<8x128xf32, #tpu.memory_space<vmem>>, vector<8x128xf32>
      %25 = arith.subf %24, %23 : vector<8x128xf32>
      %26 = math.exp %25 : vector<8x128xf32>
      %c0_10 = arith.constant 0 : index
      %c0_11 = arith.constant 0 : index
      %27 = vector.load %arg5[%c0_10, %c0_11] : memref<8x128xf32, #tpu.memory_space<vmem>>, vector<8x128xf32>
      %28 = arith.mulf %26, %27 : vector<8x128xf32>
      %c0_12 = arith.constant 0 : index
      %c0_13 = arith.constant 0 : index
      %29 = vector.load %arg6[%c0_12, %c0_13] : memref<8x128xf32, #tpu.memory_space<vmem>>, vector<8x128xf32>
      %30 = arith.subf %19, %23 : vector<8x128xf32>
      %31 = math.exp %30 : vector<8x128xf32>
      %32 = arith.addf %28, %31 : vector<8x128xf32>
      %33 = arith.addf %29, %21 : vector<8x128xf32>
      %c0_14 = arith.constant 0 : index
      %c0_15 = arith.constant 0 : index
      %34 = vector.load %arg5[%c0_14, %c0_15] : memref<8x128xf32, #tpu.memory_space<vmem>>, vector<8x128xf32>
      tpu.vector_store %arg5[%c0_14, %c0_15], %32 {strides = array<i32>} : memref<8x128xf32, #tpu.memory_space<vmem>>, vector<8x128xf32>,
      %c0_16 = arith.constant 0 : index
      %c0_17 = arith.constant 0 : index
      %35 = vector.load %arg6[%c0_16, %c0_17] : memref<8x128xf32, #tpu.memory_space<vmem>>, vector<8x128xf32>
      tpu.vector_store %arg6[%c0_16, %c0_17], %33 {strides = array<i32>} : memref<8x128xf32, #tpu.memory_space<vmem>>, vector<8x128xf32>,
      %c0_18 = arith.constant 0 : index
      %c0_19 = arith.constant 0 : index
      %36 = vector.load %arg4[%c0_18, %c0_19] : memref<8x128xf32, #tpu.memory_space<vmem>>, vector<8x128xf32>
      tpu.vector_store %arg4[%c0_18, %c0_19], %23 {strides = array<i32>} : memref<8x128xf32, #tpu.memory_space<vmem>>, vector<8x128xf32>,
    } else {
    }
    %true = arith.constant true
    %7 = arith.xori %0, %true : i1
    %8 = arith.extui %7 : i1 to i32
    %c0_i32_3 = arith.constant 0 : i32
    %9 = arith.cmpi ne, %8, %c0_i32_3 : i32
    scf.if %9 {
      %c0_5 = arith.constant 0 : index
      %c0_6 = arith.constant 0 : index
      %12 = vector.load %arg4[%c0_5, %c0_6] : memref<8x128xf32, #tpu.memory_space<vmem>>, vector<8x128xf32>
      %13 = arith.maximumf %12, %4 : vector<8x128xf32>
      %c0_7 = arith.constant 0 : index
      %c0_8 = arith.constant 0 : index
      %14 = vector.load %arg4[%c0_7, %c0_8] : memref<8x128xf32, #tpu.memory_space<vmem>>, vector<8x128xf32>
      %15 = arith.subf %14, %13 : vector<8x128xf32>
      %16 = math.exp %15 : vector<8x128xf32>
      %c0_9 = arith.constant 0 : index
      %c0_10 = arith.constant 0 : index
      %17 = vector.load %arg5[%c0_9, %c0_10] : memref<8x128xf32, #tpu.memory_space<vmem>>, vector<8x128xf32>
      %18 = arith.mulf %16, %17 : vector<8x128xf32>
      %c0_11 = arith.constant 0 : index
      %c0_12 = arith.constant 0 : index
      %19 = vector.load %arg6[%c0_11, %c0_12] : memref<8x128xf32, #tpu.memory_space<vmem>>, vector<8x128xf32>
      %20 = arith.subf %4, %13 : vector<8x128xf32>
      %21 = math.exp %20 : vector<8x128xf32>
      %22 = arith.addf %18, %21 : vector<8x128xf32>
      %23 = arith.addf %19, %4 : vector<8x128xf32>
      %c0_13 = arith.constant 0 : index
      %c0_14 = arith.constant 0 : index
      %24 = vector.load %arg5[%c0_13, %c0_14] : memref<8x128xf32, #tpu.memory_space<vmem>>, vector<8x128xf32>
      tpu.vector_store %arg5[%c0_13, %c0_14], %22 {strides = array<i32>} : memref<8x128xf32, #tpu.memory_space<vmem>>, vector<8x128xf32>,
      %c0_15 = arith.constant 0 : index
      %c0_16 = arith.constant 0 : index
      %25 = vector.load %arg6[%c0_15, %c0_16] : memref<8x128xf32, #tpu.memory_space<vmem>>, vector<8x128xf32>
      tpu.vector_store %arg6[%c0_15, %c0_16], %23 {strides = array<i32>} : memref<8x128xf32, #tpu.memory_space<vmem>>, vector<8x128xf32>,
      %c0_17 = arith.constant 0 : index
      %c0_18 = arith.constant 0 : index
      %26 = vector.load %arg4[%c0_17, %c0_18] : memref<8x128xf32, #tpu.memory_space<vmem>>, vector<8x128xf32>
      tpu.vector_store %arg4[%c0_17, %c0_18], %13 {strides = array<i32>} : memref<8x128xf32, #tpu.memory_space<vmem>>, vector<8x128xf32>,
    } else {
    }
    %10 = arith.extui %0 : i1 to i32
    %c0_i32_4 = arith.constant 0 : i32
    %11 = arith.cmpi ne, %10, %c0_i32_4 : i32
    scf.if %11 {
      %c0_5 = arith.constant 0 : index
      %c0_6 = arith.constant 0 : index
      %12 = vector.load %arg4[%c0_5, %c0_6] : memref<8x128xf32, #tpu.memory_space<vmem>>, vector<8x128xf32>
      %cst = arith.constant dense<0xFF800000> : vector<8xf32>
      %13 = vector.multi_reduction <maximumf>, %12, %cst [1] : vector<8x128xf32> to vector<8xf32>
      %14 = vector.shape_cast %13 : vector<8xf32> to vector<8x1xf32>
      %15 = vector.broadcast %14 : vector<8x1xf32> to vector<8x128xf32>
      %16 = arith.subf %12, %15 : vector<8x128xf32>
      %17 = math.exp %16 : vector<8x128xf32>
      %c0_7 = arith.constant 0 : index
      %c0_8 = arith.constant 0 : index
      %18 = vector.load %arg5[%c0_7, %c0_8] : memref<8x128xf32, #tpu.memory_space<vmem>>, vector<8x128xf32>
      %19 = arith.mulf %17, %18 : vector<8x128xf32>
      %cst_9 = arith.constant dense<0.000000e+00> : vector<8xf32>
      %20 = vector.multi_reduction <add>, %19, %cst_9 [1] : vector<8x128xf32> to vector<8xf32>
      %21 = vector.shape_cast %20 : vector<8xf32> to vector<8x1xf32>
      %c0_10 = arith.constant 0 : index
      %c0_11 = arith.constant 0 : index
      %22 = vector.load %arg6[%c0_10, %c0_11] : memref<8x128xf32, #tpu.memory_space<vmem>>, vector<8x128xf32>
      %cst_12 = arith.constant dense<0.000000e+00> : vector<8xf32>
      %23 = vector.multi_reduction <add>, %22, %cst_12 [1] : vector<8x128xf32> to vector<8xf32>
      %24 = vector.shape_cast %23 : vector<8xf32> to vector<8x1xf32>
      %25 = math.log %21 : vector<8x1xf32>
      %26 = arith.addf %14, %25 : vector<8x1xf32>
      %cst_13 = arith.constant 3.3333333E-4 : f32
      %27 = vector.broadcast %cst_13 : f32 to vector<8x1xf32>
      %28 = arith.mulf %27, %24 : vector<8x1xf32>
      %29 = arith.subf %26, %28 : vector<8x1xf32>
      %c8_i32 = arith.constant 8 : i32
      %30 = arith.muli %arg0, %c8_i32 : i32
      %31 = tpu.iota {dimensions = array<i32: 0>} : vector<8x1xi32>
      %32 = vector.broadcast %30 : i32 to vector<8x1xi32>
      %33 = arith.addi %32, %31 : vector<8x1xi32>
      %c10_i32 = arith.constant 10 : i32
      %34 = vector.broadcast %c10_i32 : i32 to vector<8x1xi32>
      %35 = arith.cmpi slt, %33, %34 : vector<8x1xi32>
      %cst_14 = arith.constant 0.000000e+00 : f32
      %36 = vector.broadcast %cst_14 : f32 to vector<8x1xf32>
      %37 = arith.select %35, %29, %36 : vector<8x1xi1>, vector<8x1xf32>
      %cst_15 = arith.constant dense<0.000000e+00> : vector<1xf32>
      %38 = vector.multi_reduction <add>, %37, %cst_15 [0] : vector<8x1xf32> to vector<1xf32>
      %39 = vector.shape_cast %38 : vector<1xf32> to vector<1x1xf32>
      %40 = vector.shape_cast %39 : vector<1x1xf32> to vector<1x1x1xf32>
      %41 = vector.broadcast %40 : vector<1x1x1xf32> to vector<1x1x128xf32>
      %c0_16 = arith.constant 0 : index
      %c0_17 = arith.constant 0 : index
      %c0_18 = arith.constant 0 : index
      %42 = vector.load %arg3[%c0_16, %c0_17, %c0_18] : memref<1x1x128xf32, #tpu.memory_space<vmem>>, vector<1x1x128xf32>
      tpu.vector_store %arg3[%c0_16, %c0_17, %c0_18], %41 {strides = array<i32>} : memref<1x1x128xf32, #tpu.memory_space<vmem>>, vector<1x1x128xf32>,
    } else {
    }
    return
  }
  func.func @transform_0(%arg0: i32, %arg1: i32) -> (i32, i32) {
    %c0_i32 = arith.constant 0 : i32
    return %arg0, %arg1 : i32, i32
  }
  func.func @transform_1(%arg0: i32, %arg1: i32) -> (i32, i32, i32) {
    %c0_i32 = arith.constant 0 : i32
    %c0_i32_0 = arith.constant 0 : i32
    %c0_i32_1 = arith.constant 0 : i32
    return %arg0, %c0_i32, %c0_i32_0 : i32, i32, i32
  }
}

</mosaic_0001>

<llo_original>
// kernel: tpu_custom_call.1
$region0: #{tpu_custom_call.1}
  #allocation0 [shape = 'u32[]', space=smem, size = 0x4, offset = 0x4, fixed_abs, tag = 'smem constant byte address 0x4 - core index']
  #allocation1 [shape = 'u32[144,128]{1,0:T(1,128)}', space=vmem, size = 0x12000, scoped, tag = 'internal scratch']
  #allocation2 [shape = 'f32[8,128]{1,0:T(8,128)}', space=vmem, size = 0x1000, scoped, tag = 'scratch operand']
  #allocation3 [shape = 'f32[8,128]{1,0:T(8,128)}', space=vmem, size = 0x1000, scoped, tag = 'scratch operand']
  #allocation4 [shape = 'f32[8,128]{1,0:T(8,128)}', space=vmem, size = 0x1000, scoped, tag = 'scratch operand']
  %s0 = inlined_call_operand.hbm [shape: f32[10,300], index: 0, kind: input, shape index: {}]
  %s1 = inlined_call_operand.hbm [shape: f32[2,1,128], index: 1, kind: output, shape index: {}]
  %s2 = sld [smem:[#allocation0]]
  $region57: #{tpu_custom_call.1} parent=0
    _
  %s4 = ssub.s32 1, %s2
  %s5 = scalar_select 0, %s4, %s2
  $region1: #{tpu_custom_call.1} parent=0
    #allocation5 [shape = 'u8[8192]{0}', space=vmem, size = 0x2000, scoped, tag = 'input window, operand 0']
    #allocation6 [shape = 's32[2]{0}', space=sflag, size = 0x8, scoped, tag = 'scoped memory for tpu_custom_call.1']
    #allocation7 [shape = 's32[2]{0}', space=sflag, size = 0x8, scoped, tag = 'scoped memory for tpu_custom_call.1']
    #allocation8 [shape = 'u8[1024]{0}', space=vmem, size = 0x400, scoped, tag = 'output window, operand 0']
    %6 = vsyncpa [#allocation6], 0
    %s7 = scalar_lea.sflag [#allocation6], 1
    %8 = vsyncpa %s7, 0
    %9 = vsyncpa [#allocation7], 0
    %s10 = scalar_lea.sflag [#allocation7], 1
    %11 = vsyncpa %s10, 0
    loop: start=0, step=1, limit=8
    $region2: #{tpu_custom_call.1} parent=1 // loop_pre_header
      _
    $region3: #{tpu_custom_call.1} parent=1 // loop_header
      %s13 = sphi 0, %s17
      %p14 = scmp.ge.s32.totalorder %s13, 8
      %s20 = sphi 0, %s32
      %s21 = sphi 0, %s28
      %s22 = sphi 0, %s20
      %s23 = sphi 0, %s21
      %s24 = sphi 0, %s22
      %s25 = sphi 0, %s23
      %s37 = sphi 0, %s39
      %s40 = sphi 0, %s37
      %s41 = sphi 0, %s40
      %s57 = sphi 0, %s41
      %s63 = sphi 0, %s65
      %s66 = sphi 0, %s63
      %s67 = sphi 0, %s66
      %s83 = sphi 0, %s67
    $region4: #{tpu_custom_call.1} parent=1 // loop_header_branch
      %16 = sbr.rel (%p14) target = $region8
    $region5: #{tpu_custom_call.1} parent=1 // loop_body
      %s18 = ssub.s32 %s13, 1
      %s19 = ssub.s32 %s13, 2
      %s26 = sadd.s32 1, %s21
      %p27 = scmp.ge.s32.totalorder %s26, 3
      %s28 = scalar_select %p27, 0, %s26
      %s29 = sadd.s32 1, %s20
      %s30 = scalar_select %p27, %s29, %s20
      %p31 = scmp.ge.s32.totalorder %s30, 2
      %s32 = scalar_select %p31, 0, %s30
      %s33 = ssub.s32 %s20, %s32
      %s34 = ssub.s32 %s21, %s28
      %s35 = sor.u32 %s33, %s34
      %p36 = scmp.eq.s32.totalorder %s35, 0
      %s38 = sadd.s32 %s37, 1
      %s39 = scalar_select %p36, %s37, %s38
      %p42 = pneg %p36
      %p43 = scmp.eq.s32.totalorder %s13, 5
      %p44 = por %p42, %p43
      %p45 = scmp.ne.s32.totalorder %s37, %s40
      %p46 = scmp.eq.s32.totalorder %s13, 0
      %p47 = por %p45, %p46
      %p48 = scmp.ne.s32.totalorder %s37, %s40
      %p49 = scmp.eq.s32.totalorder %s18, 5
      %p50 = por %p48, %p49
      %p51 = scmp.ne.s32.totalorder %s40, %s41
      %p52 = scmp.eq.s32.totalorder %s18, 0
      %p53 = por %p51, %p52
      %p54 = scmp.ne.s32.totalorder %s40, %s41
      %p55 = scmp.eq.s32.totalorder %s19, 5
      %p56 = por %p54, %p55
      %p58 = scmp.ne.s32.totalorder %s41, %s57
      %p59 = scmp.eq.s32.totalorder %s19, 0
      %p60 = por %p58, %p59
      %s61 = ssub.s32 %s20, %s32
      %p62 = scmp.eq.s32.totalorder %s61, 0
      %s64 = sadd.s32 %s63, 1
      %s65 = scalar_select %p62, %s63, %s64
      %p68 = pneg %p62
      %p69 = scmp.eq.s32.totalorder %s13, 5
      %p70 = por %p68, %p69
      %p71 = scmp.ne.s32.totalorder %s63, %s66
      %p72 = scmp.eq.s32.totalorder %s13, 0
      %p73 = por %p71, %p72
      %p74 = scmp.ne.s32.totalorder %s63, %s66
      %p75 = scmp.eq.s32.totalorder %s18, 5
      %p76 = por %p74, %p75
      %p77 = scmp.ne.s32.totalorder %s66, %s67
      %p78 = scmp.eq.s32.totalorder %s18, 0
      %p79 = por %p77, %p78
      %p80 = scmp.ne.s32.totalorder %s66, %s67
      %p81 = scmp.eq.s32.totalorder %s19, 5
      %p82 = por %p80, %p81
      %p84 = scmp.ne.s32.totalorder %s67, %s83
      %p85 = scmp.eq.s32.totalorder %s19, 0
      %p86 = por %p84, %p85
      %p87 = scmp.le.s32.totalorder 1, %s13
      %p88 = scmp.lt.s32.totalorder %s13, 7
      %p89 = pnand %p87, %p88
      %p90 = pneg %p89
      // Predicated region
      $region9: #{tpu_custom_call.1} parent=5 // pred_check
        _
      $region10: #{tpu_custom_call.1} parent=5 // pred_check_branch
        %92 = sbr.rel (%p89) target = $region12
      $region11: #{tpu_custom_call.1} parent=5 // pred_region
        %s93 = ssub.s32 %s13, 1
      $region12: #{tpu_custom_call.1} parent=5 // pred_fallthru
        _
      %p94 = scmp.lt.s32.totalorder %s13, 6
      // Predicated region
      $region13: #{tpu_custom_call.1} parent=5 // pred_check
        %p95 = pneg %p94
      $region14: #{tpu_custom_call.1} parent=5 // pred_check_branch
        %97 = sbr.rel (%p95) target = $region16
      $region15: #{tpu_custom_call.1} parent=5 // pred_region
        // Predicated region
        $region17: #{tpu_custom_call.1} parent=15 // pred_check
          %p98 = pneg %p47
        $region18: #{tpu_custom_call.1} parent=15 // pred_check_branch
          %100 = sbr.rel (%p98) target = $region20
        $region19: #{tpu_custom_call.1} parent=15 // pred_region
          %s101 = sand.u32 %s37, 1
          %s102 = scalar_lea.sflag [#allocation6], %s101
          %s103 = sand.u32 %s37, 1
          %s104 = smul.addr %s103, 8
          %s105 = scalar_lea.vmem [#allocation5], %s104
          %s107 = ssub.s32 128, 128
          %108 = vsyncadd %s102, %s107
          %s109 = smul.addr %s20, 3
          %s110 = sadd.s32 %s21, %s109
          %s111 = smul.addr %s110, 128
          %s112 = scalar_lea.hbm %s0, %s111
          %s114 = sshll.u32 %s105, 4
          %s115 = int_to_ptr.vmem [resolvable:$true] %s114
          %117 = dma.hbm_to_vmem [thread:$0]  %s112, 128, %s115, %s102
        $region20: #{tpu_custom_call.1} parent=15 // pred_fallthru
          _
      $region16: #{tpu_custom_call.1} parent=5 // pred_fallthru
        _
      %p118 = scmp.le.s32.totalorder 1, %s13
      %p119 = scmp.lt.s32.totalorder %s13, 7
      %p120 = pnand %p118, %p119
      %p121 = pneg %p120
      // Predicated region
      $region21: #{tpu_custom_call.1} parent=5 // pred_check
        _
      $region22: #{tpu_custom_call.1} parent=5 // pred_check_branch
        %123 = sbr.rel (%p120) target = $region24
      $region23: #{tpu_custom_call.1} parent=5 // pred_region
        %s124 = ssub.s32 %s13, 1
        %s125 = sand.u32 %s40, 1
        %s126 = scalar_lea.sflag [#allocation6], %s125
        %s127 = sand.u32 %s40, 1
        %s128 = smul.addr %s127, 8
        %s129 = scalar_lea.vmem [#allocation5], %s128
        // Predicated region
        $region25: #{tpu_custom_call.1} parent=23 // pred_check
          %p130 = pneg %p53
        $region26: #{tpu_custom_call.1} parent=23 // pred_check_branch
          %132 = sbr.rel (%p130) target = $region28
        $region27: #{tpu_custom_call.1} parent=23 // pred_region
          %133 = dma.done %s126, 128
        $region28: #{tpu_custom_call.1} parent=23 // pred_fallthru
          _
        %s134 = sand.u32 %s40, 1
        %s135 = scalar_lea.sflag [#allocation6], %s134
        %s136 = sand.u32 %s40, 1
        %s137 = smul.addr %s136, 8
        %s138 = scalar_lea.vmem [#allocation5], %s137
        %p139 = pneg %p53
        %p140 = pneg %p50
        %p141 = pneg %p79
        %p142 = pneg %p76
        %s143 = sand.u32 %s66, 1
        %s144 = scalar_lea.sflag [#allocation7], %s143
        %s145 = sand.u32 %s66, 1
        %s146 = scalar_lea.vmem [#allocation8], %s145
        %p147 = scmp.eq.s32.totalorder %s23, 2
        %p148 = scmp.eq.s32.totalorder %s23, 0
        // Predicated region
        $region29: #{tpu_custom_call.1} parent=23 // pred_check
          %p149 = pneg %p148
        $region30: #{tpu_custom_call.1} parent=23 // pred_check_branch
          %151 = sbr.rel (%p149) target = $region32
        $region31: #{tpu_custom_call.1} parent=23 // pred_region
          %152 = vst [vmem:[#allocation2] sm:$0xff] -1e+30
          %153 = vst [vmem:[#allocation3] sm:$0xff] 0.0
          %154 = vst [vmem:[#allocation4] sm:$0xff] 0.0
        $region32: #{tpu_custom_call.1} parent=23 // pred_fallthru
          _
        %v155 = vld [vmem:[%s129] sm:$0xff]
        // Predicated region
        $region33: #{tpu_custom_call.1} parent=23 // pred_check
          %p156 = pneg %p147
        $region34: #{tpu_custom_call.1} parent=23 // pred_check_branch
          %158 = sbr.rel (%p156) target = $region36
        $region35: #{tpu_custom_call.1} parent=23 // pred_region
          %s159 = smul.u32 %s23, 128
          %v160 = vlaneseq
          %v161 = vand.u32 %v160, 127
          %v162 = vstv %s159
          %v163 = vadd.s32 %v162, %v161
          %vm164 = vcmp.lt.s32.totalorder %v163, 300
          %v165 = vsel %vm164, %v155, -1e+30
          %v166 = vsel %vm164, %v155, 0.0
          %v167 = vld [vmem:[#allocation2] sm:$0xff]
          %v168 = vmax.f32 %v167, %v165
          %v169 = vsub.f32 %v167, %v168
          %v170 = vmul.f32 %v169, 1.442695
          %v171 = vpow.pop %v170
          %v172 = vld [vmem:[#allocation3] sm:$0xff]
          %v173 = vmul.f32 %v171, %v172
          %v174 = vld [vmem:[#allocation4] sm:$0xff]
          %v175 = vsub.f32 %v165, %v168
          %v176 = vmul.f32 %v175, 1.442695
          %v177 = vpow.pop %v176
          %v178 = vadd.f32 %v173, %v177
          %v179 = vadd.f32 %v174, %v166
          %180 = vst [vmem:[#allocation3] sm:$0xff] %v178
          %181 = vst [vmem:[#allocation4] sm:$0xff] %v179
          %182 = vst [vmem:[#allocation2] sm:$0xff] %v168
        $region36: #{tpu_custom_call.1} parent=23 // pred_fallthru
          _
        %p183 = scmp.ne.s32.totalorder %s23, 2
        // Predicated region
        $region37: #{tpu_custom_call.1} parent=23 // pred_check
          %p184 = pneg %p183
        $region38: #{tpu_custom_call.1} parent=23 // pred_check_branch
          %186 = sbr.rel (%p184) target = $region40
        $region39: #{tpu_custom_call.1} parent=23 // pred_region
          %v187 = vld [vmem:[#allocation2] sm:$0xff]
          %v188 = vmax.f32 %v187, %v155
          %v189 = vsub.f32 %v187, %v188
          %v190 = vmul.f32 %v189, 1.442695
          %v191 = vpow.pop %v190
          %v192 = vld [vmem:[#allocation3] sm:$0xff]
          %v193 = vmul.f32 %v191, %v192
          %v194 = vld [vmem:[#allocation4] sm:$0xff]
          %v195 = vsub.f32 %v155, %v188
          %v196 = vmul.f32 %v195, 1.442695
          %v197 = vpow.pop %v196
          %v198 = vadd.f32 %v193, %v197
          %v199 = vadd.f32 %v194, %v155
          %200 = vst [vmem:[#allocation3] sm:$0xff] %v198
          %201 = vst [vmem:[#allocation4] sm:$0xff] %v199
          %202 = vst [vmem:[#allocation2] sm:$0xff] %v188
        $region40: #{tpu_custom_call.1} parent=23 // pred_fallthru
          _
        // Predicated region
        $region41: #{tpu_custom_call.1} parent=23 // pred_check
          %p203 = pneg %p147
        $region42: #{tpu_custom_call.1} parent=23 // pred_check_branch
          %205 = sbr.rel (%p203) target = $region44
        $region43: #{tpu_custom_call.1} parent=23 // pred_region
          %v206 = vld [vmem:[#allocation2] sm:$0xff]
          %207 = vmax.xlane.f32.xlu0 %v206
          %v208 = vpop.xlane.xlu0 %207
          %v209 = vsub.f32 %v206, %v208
          %v210 = vmul.f32 %v209, 1.442695
          %v211 = vpow.pop %v210
          %v212 = vld [vmem:[#allocation3] sm:$0xff]
          %v213 = vmul.f32 %v211, %v212
          %214 = vadd.xlane.f32.xlu0 %v213
          %v215 = vpop.xlane.xlu0 %214
          %v216 = vld [vmem:[#allocation4] sm:$0xff]
          %217 = vadd.xlane.f32.xlu0 %v216
          %v218 = vpop.xlane.xlu0 %217
          %v219 = vlog2.pop %v215
          %v220 = vmul.f32 %v219, 0.6931472
          %v221 = vadd.f32 %v208, %v220
          %v222 = vmul.f32 %v218, 0.00033333333
          %v223 = vsub.f32 %v221, %v222
          %s224 = smul.u32 %s22, 8
          %v225 = vlaneseq
          %v226 = vshrl.u32 %v225, 7
          %v227 = vstv %s224
          %v228 = vadd.s32 %v227, %v226
          %vm229 = vcmp.lt.s32.totalorder %v228, 10
          %v230 = vsel %vm229, %v223, 0.0
          %v231 = vrot.slane %v230, 4
          %v232 = vadd.f32 %v230, %v231
          %v233 = vrot.slane %v232, 2
          %v234 = vadd.f32 %v232, %v233
          %v235 = vrot.slane %v234, 1
          %v236 = vadd.f32 %v234, %v235
          %237 = vst [vmem:[%s146] sm:$0x1] %v236
        $region44: #{tpu_custom_call.1} parent=23 // pred_fallthru
          _
        %s238 = sand.u32 %s66, 1
        %s239 = scalar_lea.sflag [#allocation7], %s238
        %s240 = sand.u32 %s66, 1
        %s241 = scalar_lea.vmem [#allocation8], %s240
        // Predicated region
        $region45: #{tpu_custom_call.1} parent=23 // pred_check
          %p242 = pneg %p76
        $region46: #{tpu_custom_call.1} parent=23 // pred_check_branch
          %244 = sbr.rel (%p242) target = $region48
        $region47: #{tpu_custom_call.1} parent=23 // pred_region
          %s246 = ssub.s32 16, 16
          %247 = vsyncadd %s239, %s246
          %s248 = smul.addr %s22, 16
          %s249 = scalar_lea.hbm %s1, %s248
          %s251 = sshll.u32 %s241, 4
          %s252 = int_to_ptr.vmem [resolvable:$true] %s251
          %254 = dma.vmem_to_hbm [thread:$0]  %s252, 16, %s249, %s239
        $region48: #{tpu_custom_call.1} parent=23 // pred_fallthru
          _
      $region24: #{tpu_custom_call.1} parent=5 // pred_fallthru
        _
      %p255 = scmp.le.s32.totalorder 2, %s13
      // Predicated region
      $region49: #{tpu_custom_call.1} parent=5 // pred_check
        %p256 = pneg %p255
      $region50: #{tpu_custom_call.1} parent=5 // pred_check_branch
        %258 = sbr.rel (%p256) target = $region52
      $region51: #{tpu_custom_call.1} parent=5 // pred_region
        %s259 = ssub.s32 %s13, 2
        // Predicated region
        $region53: #{tpu_custom_call.1} parent=51 // pred_check
          %p260 = pneg %p82
        $region54: #{tpu_custom_call.1} parent=51 // pred_check_branch
          %262 = sbr.rel (%p260) target = $region56
        $region55: #{tpu_custom_call.1} parent=51 // pred_region
          %s263 = sand.u32 %s67, 1
          %s264 = scalar_lea.sflag [#allocation7], %s263
          %s265 = sand.u32 %s67, 1
          %s266 = scalar_lea.vmem [#allocation8], %s265
          %267 = dma.done %s264, 16
        $region56: #{tpu_custom_call.1} parent=51 // pred_fallthru
          _
      $region52: #{tpu_custom_call.1} parent=5 // pred_fallthru
        _
    $region6: #{tpu_custom_call.1} parent=1 // loop_footer
      %s17 = sadd.s32 1, %s13
    $region7: #{tpu_custom_call.1} parent=1 // loop_footer_branch
      %12 = sbr.rel target = $region3
    $region8: #{tpu_custom_call.1} parent=1 // loop_exit
      _
    %268 = vsyncpa [#allocation6], 1
    %s269 = scalar_lea.sflag [#allocation6], 1
    %270 = vsyncpa %s269, 1
    %271 = vsyncpa [#allocation7], 1
    %s272 = scalar_lea.sflag [#allocation7], 1
    %273 = vsyncpa %s272, 1

</llo_original>
